<compile_context>
chip_gen: v5e
topology: v5e:2x2
jax: 0.10.0
libtpu: 0.0.40
codegen_flags: <defaults>
</compile_context>

<pallas_src>
import jax
import jax.numpy as jnp
from jax.experimental import pallas as pl
from jax.experimental.pallas import tpu as pltpu

# `eps` is a module-level global in the original define_nn.py (undefined in the
# snippet); fixed to a small constant here.
EPS = 0.01


def hypernet_kernel(feat_ref, wn_ref, out_ref):
    """out = feat * clamp(w + EPS * noise, 0, 1); wn_ref packs [w; noise] as (2, TF)."""
    w = wn_ref[0:1, :]                                   # (1, TF)
    n = wn_ref[1:2, :]                                   # (1, TF)
    gate = jnp.clip(w + EPS * n, 0.0, 1.0)               # VPU, scalar clip bounds
    out_ref[...] = feat_ref[...] * gate                  # [TB,TF] * [1,TF] broadcast


def _vmem_capacity_bytes():
    """Physical VMEM per core; conservative 64 MiB fallback (valid on all gens)."""
    try:
        info = pltpu.get_tpu_info()
        cap = getattr(info, "vmem_capacity_bytes", None)
        if cap:
            return int(cap)
    except Exception:
        pass
    return 64 * 1024 * 1024


def _prefer_core_parallel():
    """Only attempt an explicit cross-TensorCore split on multi-TC chips (v7x)."""
    try:
        kind = jax.devices()[0].device_kind.lower()
    except Exception:
        return False
    return "v7" in kind


def _choose_tiles(B, F, itemsize, tile_target_bytes):
    """Pick (TB, TF) so one feature/output tile is ~tile_target_bytes.

    Lane (feature) dim first: the full F when 8 rows of it fit the budget (or
    F <= 128, where the full dim is the only legal choice); otherwise the
    largest multiple of 128 that fits with 8 rows.  Then batch rows (multiple
    of 8, or the full batch) fill the remaining budget.  Edge blocks on either
    axis are handled by Pallas's masked partial blocks.
    """
    if F <= 128 or F * 8 * itemsize <= tile_target_bytes:
        TF = F
    else:
        TF = max(128, ((tile_target_bytes // (8 * itemsize)) // 128) * 128)

    rows_budget = max(8, tile_target_bytes // (TF * itemsize))
    if B <= 8 or B <= rows_budget:
        TB = B
    else:
        TB = max(8, (rows_budget // 8) * 8)
    return TB, TF


def hypernetwork_forward(features, weights, noise, *, tile_target_bytes=None):
    """features: [B, F] f32, weights: [F] f32, noise: [F] f32 -> [B, F] f32."""
    B, F = features.shape
    itemsize = jnp.dtype(features.dtype).itemsize

    # Single (2, F) gate operand: halves the per-step small-DMA descriptor count.
    wn = jnp.stack([weights.astype(jnp.float32), noise.astype(jnp.float32)], axis=0)

    vmem_cap = _vmem_capacity_bytes()
    if tile_target_bytes is None:
        # 2 double-buffered big arrays (feat in + out) => 4 big tiles resident.
        tile_target_bytes = int(vmem_cap * 0.9) // 5
    TB, TF = _choose_tiles(B, F, itemsize, tile_target_bytes)

    # Feature tiles outer, batch tiles inner: the (2, TF) gate block index is
    # constant across the inner loop -> not re-fetched every grid step.
    grid = (pl.cdiv(F, TF), pl.cdiv(B, TB))

    tile_bytes = TB * TF * itemsize
    wn_tile_bytes = 2 * TF * 4
    needed = 2 * (2 * tile_bytes + wn_tile_bytes) + (2 << 20)  # double-buffered + slack
    vmem_limit = int(min(max(needed, 32 << 20), int(vmem_cap * 0.9)))

    out_shape = jax.ShapeDtypeStruct((B, F), features.dtype)
    in_specs = [
        pl.BlockSpec((TB, TF), lambda f, b: (b, f)),   # features
        pl.BlockSpec((2, TF), lambda f, b: (0, f)),    # stacked [weights; noise]
    ]
    out_spec = pl.BlockSpec((TB, TF), lambda f, b: (b, f))

    def run(semantics):
        return pl.pallas_call(
            hypernet_kernel,
            out_shape=out_shape,
            grid=grid,
            in_specs=in_specs,
            out_specs=out_spec,
            compiler_params=pltpu.CompilerParams(
                dimension_semantics=semantics,
                vmem_limit_bytes=vmem_limit,
            ),
        )(features, wn)

    if grid[0] >= 2 and _prefer_core_parallel():
        try:
            # v7x: shard the feature-tile axis across both TensorCores (each has
            # its own DMA path to HBM) -> ~2x for this bandwidth-bound stream.
            return run((pltpu.CORE_PARALLEL, pltpu.ARBITRARY))
        except Exception:
            pass  # fall back to plain parallel semantics below
    return run(("parallel", "parallel"))


def _reference(features, weights, noise):
    gate = jnp.clip(weights + EPS * noise, 0.0, 1.0)
    return features * gate[None, :]


if __name__ == "__main__":
    key = jax.random.PRNGKey(0)
    k_feat, k_noise, k_feat2, k_noise2 = jax.random.split(key, 4)

    # --- small shape consistent with the module: batch=8, feature_dim=128 ---
    B, feature_dim = 8, 128
    features = jax.random.normal(k_feat, (B, feature_dim), dtype=jnp.float32)
    # nn.Parameter(torch.ones(feature_dim)) -> deterministic init of ones
    weights = jnp.ones((feature_dim,), dtype=jnp.float32)
    # TODO(synk): torch.randn draws fresh noise on every forward(); here the
    # Gaussian noise is drawn once (deterministically) in the JAX wrapper and
    # passed in so the kernel stays verifiable against a pure-JAX reference.
    noise = jax.random.normal(k_noise, (feature_dim,), dtype=jnp.float32)

    out = jax.block_until_ready(hypernetwork_forward(features, weights, noise))
    assert jnp.allclose(out, _reference(features, weights, noise), atol=1e-6), \
        "mismatch vs reference (small)"

    # --- tiled path: force small tiles -> multi-step grid with masked edge
    #     blocks on both batch (523 % 8 != 0) and feature (500 % 128 != 0) axes.
    B2, F2 = 523, 500
    features2 = jax.random.normal(k_feat2, (B2, F2), dtype=jnp.float32)
    weights2 = jnp.ones((F2,), dtype=jnp.float32)
    noise2 = jax.random.normal(k_noise2, (F2,), dtype=jnp.float32)

    out2 = jax.block_until_ready(
        hypernetwork_forward(features2, weights2, noise2, tile_target_bytes=8 * 1024))
    assert jnp.allclose(out2, _reference(features2, weights2, noise2), atol=1e-6), \
        "mismatch vs reference (tiled)"

    print("KERNEL_OK")
</pallas_src>

<mosaic_0001>
module attributes {stable_mosaic.version = 11 : i64} {
  func.func @hypernet_kernel(%arg0: i32, %arg1: i32, %arg2: memref<8x128xf32, #tpu.memory_space<vmem>>, %arg3: memref<2x128xf32, #tpu.memory_space<vmem>>, %arg4: memref<8x128xf32, #tpu.memory_space<vmem>>) attributes {dimension_semantics = [#tpu.dimension_semantics<parallel>, #tpu.dimension_semantics<parallel>], iteration_bounds = array<i64: 1, 1>, scalar_prefetch = 0 : i64, scratch_operands = 0 : i64, tpu.core_type = #tpu.core_type<tc>, window_params = [{transform_indices = @transform_0, window_bounds = array<i64: 8, 128>}, {transform_indices = @transform_1, window_bounds = array<i64: 2, 128>}, {transform_indices = @transform_2, window_bounds = array<i64: 8, 128>}]} {
    %c0 = arith.constant 0 : index
    %c0_0 = arith.constant 0 : index
    %0 = vector.load %arg3[%c0, %c0_0] : memref<2x128xf32, #tpu.memory_space<vmem>>, vector<1x128xf32>
    %c1 = arith.constant 1 : index
    %c0_1 = arith.constant 0 : index
    %1 = vector.load %arg3[%c1, %c0_1] : memref<2x128xf32, #tpu.memory_space<vmem>>, vector<1x128xf32>
    %cst = arith.constant 0.00999999977 : f32
    %2 = vector.broadcast %cst : f32 to vector<1x128xf32>
    %3 = arith.mulf %2, %1 : vector<1x128xf32>
    %4 = arith.addf %0, %3 : vector<1x128xf32>
    %cst_2 = arith.constant 0.000000e+00 : f32
    %cst_3 = arith.constant 1.000000e+00 : f32
    %5 = vector.broadcast %cst_2 : f32 to vector<1x128xf32>
    %6 = arith.maximumf %5, %4 : vector<1x128xf32>
    %7 = vector.broadcast %cst_3 : f32 to vector<1x128xf32>
    %8 = arith.minimumf %7, %6 : vector<1x128xf32>
    %c0_4 = arith.constant 0 : index
    %c0_5 = arith.constant 0 : index
    %9 = vector.load %arg2[%c0_4, %c0_5] : memref<8x128xf32, #tpu.memory_space<vmem>>, vector<8x128xf32>
    %10 = vector.broadcast %8 : vector<1x128xf32> to vector<8x128xf32>
    %11 = arith.mulf %9, %10 : vector<8x128xf32>
    %c0_6 = arith.constant 0 : index
    %c0_7 = arith.constant 0 : index
    %12 = vector.load %arg4[%c0_6, %c0_7] : memref<8x128xf32, #tpu.memory_space<vmem>>, vector<8x128xf32>
    tpu.vector_store %arg4[%c0_6, %c0_7], %11 {strides = array<i32>} : memref<8x128xf32, #tpu.memory_space<vmem>>, vector<8x128xf32>,
    return
  }
  func.func @transform_0(%arg0: i32, %arg1: i32) -> (i32, i32) {
    %c0_i32 = arith.constant 0 : i32
    return %arg1, %arg0 : i32, i32
  }
  func.func @transform_1(%arg0: i32, %arg1: i32) -> (i32, i32) {
    %c0_i32 = arith.constant 0 : i32
    %c0_i32_0 = arith.constant 0 : i32
    return %c0_i32, %arg0 : i32, i32
  }
  func.func @transform_2(%arg0: i32, %arg1: i32) -> (i32, i32) {
    %c0_i32 = arith.constant 0 : i32
    return %arg1, %arg0 : i32, i32
  }
}

</mosaic_0001>

<llo_original>
// kernel: tpu_custom_call.1
$region0: #{tpu_custom_call.1}
  #allocation0 [shape = 'u32[]', space=smem, size = 0x4, offset = 0x4, fixed_abs, tag = 'smem constant byte address 0x4 - core index']
  #allocation1 [shape = 'u32[72,128]{1,0:T(1,128)}', space=vmem, size = 0x9000, scoped, tag = 'internal scratch']
  %s0 = inlined_call_operand.hbm [shape: f32[8,128], index: 0, kind: input, shape index: {}]
  %s1 = inlined_call_operand.hbm [shape: f32[2,128], index: 1, kind: input, shape index: {}]
  %s2 = inlined_call_operand.hbm [shape: f32[8,128], index: 2, kind: output, shape index: {}]
  %s3 = sld [smem:[#allocation0]]
  $region26: #{tpu_custom_call.1} parent=0
    _
  %s5 = ssub.s32 1, %s3
  %s6 = scalar_select 0, %s5, %s3
  $region1: #{tpu_custom_call.1} parent=0
    #allocation2 [shape = 'u8[4096]{0}', space=vmem, size = 0x1000, scoped, tag = 'input window, operand 0, single buffered']
    #allocation3 [shape = 's32[1]{0}', space=sflag, size = 0x4, scoped, tag = 'scoped memory for tpu_custom_call.1']
    #allocation4 [shape = 's32[1]{0}', space=sflag, size = 0x4, scoped, tag = 'scoped memory for tpu_custom_call.1']
    #allocation5 [shape = 'u8[1024]{0}', space=vmem, size = 0x400, scoped, tag = 'input window, operand 1, single buffered']
    #allocation6 [shape = 's32[1]{0}', space=sflag, size = 0x4, scoped, tag = 'scoped memory for tpu_custom_call.1']
    #allocation7 [shape = 'u8[4096]{0}', space=vmem, size = 0x1000, scoped, tag = 'output window, operand 0, single buffered']
    %7 = vsyncpa [#allocation3], 0
    %8 = vsyncpa [#allocation6], 0
    %9 = vsyncpa [#allocation4], 0
    // Predicated region
    $region2: #{tpu_custom_call.1} parent=1 // pred_check
      _
    $region3: #{tpu_custom_call.1} parent=1 // pred_check_branch
      %11 = sbr.rel (0) target = $region5
    $region4: #{tpu_custom_call.1} parent=1 // pred_region
      %13 = vsyncadd [#allocation3], 0
      %s15 = sshll.u32 %s0, 4
      %s16 = int_to_ptr.hbm [resolvable:$true] %s15
      %s17 = sshll.u32 [#allocation2], 4
      %s18 = int_to_ptr.vmem [resolvable:$true] %s17
      %20 = dma.hbm_to_vmem [thread:$0]  %s16, 128, %s18, [#allocation3]
    $region5: #{tpu_custom_call.1} parent=1 // pred_fallthru
      _
    // Predicated region
    $region6: #{tpu_custom_call.1} parent=1 // pred_check
      _
    $region7: #{tpu_custom_call.1} parent=1 // pred_check_branch
      %22 = sbr.rel (0) target = $region9
    $region8: #{tpu_custom_call.1} parent=1 // pred_region
      %24 = vsyncadd [#allocation6], 0
      %s26 = sshll.u32 %s1, 4
      %s27 = int_to_ptr.hbm [resolvable:$true] %s26
      %s28 = sshll.u32 [#allocation5], 4
      %s29 = int_to_ptr.vmem [resolvable:$true] %s28
      %31 = dma.hbm_to_vmem [thread:$0]  %s27, 32, %s29, [#allocation6]
    $region9: #{tpu_custom_call.1} parent=1 // pred_fallthru
      _
    // Predicated region
    $region10: #{tpu_custom_call.1} parent=1 // pred_check
      _
    $region11: #{tpu_custom_call.1} parent=1 // pred_check_branch
      %33 = sbr.rel (0) target = $region13
    $region12: #{tpu_custom_call.1} parent=1 // pred_region
      %35 = dma.done [#allocation3], 128
    $region13: #{tpu_custom_call.1} parent=1 // pred_fallthru
      _
    // Predicated region
    $region14: #{tpu_custom_call.1} parent=1 // pred_check
      _
    $region15: #{tpu_custom_call.1} parent=1 // pred_check_branch
      %37 = sbr.rel (0) target = $region17
    $region16: #{tpu_custom_call.1} parent=1 // pred_region
      %39 = dma.done [#allocation6], 32
    $region17: #{tpu_custom_call.1} parent=1 // pred_fallthru
      _
    %v40 = vld [vmem:[#allocation5] sm:$0x1]
    %v41 = vld [vmem:[#allocation5 + $0x1] sm:$0x1]
    %v42 = vmul.f32 %v41, 0.01
    %v43 = vadd.f32 %v40, %v42
    %v44 = vmax.f32 %v43, 0.0
    %v45 = vmin.f32 %v44, 1.0
    %v46 = vld [vmem:[#allocation2] sm:$0xff]
    %v47 = vperm.slane %v45, 0
    %v48 = vmul.f32 %v46, %v47
    %49 = vst [vmem:[#allocation7] sm:$0xff] %v48
    // Predicated region
    $region18: #{tpu_custom_call.1} parent=1 // pred_check
      _
    $region19: #{tpu_custom_call.1} parent=1 // pred_check_branch
      %51 = sbr.rel (0) target = $region21
    $region20: #{tpu_custom_call.1} parent=1 // pred_region
      %53 = vsyncadd [#allocation4], 0
      %s55 = sshll.u32 [#allocation7], 4
      %s56 = int_to_ptr.vmem [resolvable:$true] %s55
      %s57 = sshll.u32 %s2, 4
      %s58 = int_to_ptr.hbm [resolvable:$true] %s57
      %60 = dma.vmem_to_hbm [thread:$0]  %s56, 128, %s58, [#allocation4]
    $region21: #{tpu_custom_call.1} parent=1 // pred_fallthru
      _
    // Predicated region
    $region22: #{tpu_custom_call.1} parent=1 // pred_check
      _
    $region23: #{tpu_custom_call.1} parent=1 // pred_check_branch
      %62 = sbr.rel (0) target = $region25
    $region24: #{tpu_custom_call.1} parent=1 // pred_region
      %64 = dma.done [#allocation4], 128
    $region25: #{tpu_custom_call.1} parent=1 // pred_fallthru
      _
    %65 = vsyncpa [#allocation3], 1
    %66 = vsyncpa [#allocation6], 1
    %67 = vsyncpa [#allocation4], 1

</llo_original>
